<compile_context>
chip_gen: v7x
topology: tpu7x:2x2x1
jax: 0.10.0
libtpu: 0.0.40
codegen_flags: <defaults>
</compile_context>

<pallas_src>
import jax
import jax.numpy as jnp
from jax.experimental import pallas as pl
from jax.experimental.pallas import tpu as pltpu

_LANE = 1024          # last-dim width: multiple of 128 -> lane-dense stores
_TILE_ROWS = 512      # rows per grid step (multiple of 8); ~8 MiB VMEM live


def _square_kernel(x_ref, o_ref):
    x = x_ref[...]
    o_ref[...] = x * x


def positivity_activation(x, *, tile_rows=_TILE_ROWS, lane=_LANE):
    """Elementwise square of `x` (any shape), computed by a Pallas TPU kernel."""
    orig_shape = x.shape
    n = int(x.size)
    itemsize = jnp.dtype(x.dtype).itemsize

    # Flatten to a lane-dense 2-D slab (rows, lane).
    rows = pl.cdiv(n, lane)
    # Row tile: multiple of 8 (sublane constraint), capped by tile_rows.
    tb = min(tile_rows, max(rows, 8))
    tb = pl.cdiv(tb, 8) * 8
    rows_padded = pl.cdiv(rows, tb) * tb
    n_padded = rows_padded * lane

    flat = x.reshape(-1)
    if n_padded != n:
        flat = jnp.pad(flat, (0, n_padded - n))
    x2d = flat.reshape(rows_padded, lane)

    grid = (rows_padded // tb,)
    out2d = pl.pallas_call(
        _square_kernel,
        out_shape=jax.ShapeDtypeStruct((rows_padded, lane), x.dtype),
        grid=grid,
        in_specs=[pl.BlockSpec((tb, lane), lambda i: (i, 0))],
        out_specs=pl.BlockSpec((tb, lane), lambda i: (i, 0)),
        compiler_params=pltpu.CompilerParams(
            dimension_semantics=("parallel",),
        ),
        cost_estimate=pl.CostEstimate(
            flops=n_padded,                       # one mul per element
            transcendentals=0,
            bytes_accessed=2 * n_padded * itemsize,  # read x, write out
        ),
    )(x2d)

    return out2d.reshape(-1)[:n].reshape(orig_shape)


if __name__ == "__main__":
    # Small shapes consistent with an activation module: (batch, C, H, W).
    key = jax.random.PRNGKey(0)
    x = jax.random.normal(key, (2, 4, 16, 16), dtype=jnp.float32)

    out = positivity_activation(x)
    jax.block_until_ready(out)

    # Pure-JAX reference of the same forward pass: torch.square(input).
    ref = jnp.square(x)
    assert out.shape == x.shape
    assert out.dtype == x.dtype
    assert jnp.allclose(out, ref, atol=0.0, rtol=0.0)

    print("KERNEL_OK")
</pallas_src>

<mosaic_0001>
module attributes {stable_mosaic.version = 11 : i64} {
  func.func @_square_kernel(%arg0: i32, %arg1: memref<8x1024xf32, #tpu.memory_space<vmem>>, %arg2: memref<8x1024xf32, #tpu.memory_space<vmem>>) attributes {dimension_semantics = [#tpu.dimension_semantics<parallel>], iteration_bounds = array<i64: 1>, scalar_prefetch = 0 : i64, scratch_operands = 0 : i64, tpu.core_type = #tpu.core_type<tc>, window_params = [{transform_indices = @transform_0, window_bounds = array<i64: 8, 1024>}, {transform_indices = @transform_1, window_bounds = array<i64: 8, 1024>}]} {
    %c0 = arith.constant 0 : index
    %c0_0 = arith.constant 0 : index
    %0 = vector.load %arg1[%c0, %c0_0] : memref<8x1024xf32, #tpu.memory_space<vmem>>, vector<8x1024xf32>
    %1 = arith.mulf %0, %0 : vector<8x1024xf32>
    %c0_1 = arith.constant 0 : index
    %c0_2 = arith.constant 0 : index
    %2 = vector.load %arg2[%c0_1, %c0_2] : memref<8x1024xf32, #tpu.memory_space<vmem>>, vector<8x1024xf32>
    tpu.vector_store %arg2[%c0_1, %c0_2], %1 {strides = array<i32>} : memref<8x1024xf32, #tpu.memory_space<vmem>>, vector<8x1024xf32>,
    return
  }
  func.func @transform_0(%arg0: i32) -> (i32, i32) {
    %c0_i32 = arith.constant 0 : i32
    %c0_i32_0 = arith.constant 0 : i32
    return %arg0, %c0_i32 : i32, i32
  }
  func.func @transform_1(%arg0: i32) -> (i32, i32) {
    %c0_i32 = arith.constant 0 : i32
    %c0_i32_0 = arith.constant 0 : i32
    return %arg0, %c0_i32 : i32, i32
  }
}

</mosaic_0001>

<llo_original>
// kernel: tpu_custom_call.1
$region0: #{tpu_custom_call.1}
  #allocation0 [shape = 'u32[]', space=smem, size = 0x4, offset = 0x4, fixed_abs, tag = 'smem constant byte address 0x4 - core index']
  #allocation1 [shape = 'u32[144,128]{1,0:T(1,128)}', space=vmem, size = 0x12000, scoped, tag = 'internal scratch']
  %s0 = inlined_call_operand.hbm [shape: f32[8,1024], index: 0, kind: input, shape index: {}]
  %s1 = inlined_call_operand.hbm [shape: f32[8,1024], index: 1, kind: output, shape index: {}]
  %s2 = sld [smem:[#allocation0]]
  $region18: #{tpu_custom_call.1} parent=0
    _
  %s4 = ssub.s32 1, %s2
  %s5 = scalar_select 0, %s4, %s2
  $region1: #{tpu_custom_call.1} parent=0
    #allocation2 [shape = 'u8[32768]{0}', space=vmem, size = 0x8000, scoped, tag = 'input window, operand 0, single buffered']
    #allocation3 [shape = 's32[1]{0}', space=sflag, size = 0x4, scoped, tag = 'scoped memory for tpu_custom_call.1']
    #allocation4 [shape = 's32[1]{0}', space=sflag, size = 0x4, scoped, tag = 'scoped memory for tpu_custom_call.1']
    #allocation5 [shape = 'u8[32768]{0}', space=vmem, size = 0x8000, scoped, tag = 'output window, operand 0, single buffered']
    %6 = vsyncpa [#allocation3], 0
    %7 = vsyncpa [#allocation4], 0
    // Predicated region
    $region2: #{tpu_custom_call.1} parent=1 // pred_check
      _
    $region3: #{tpu_custom_call.1} parent=1 // pred_check_branch
      %9 = sbr.rel (0) target = $region5
    $region4: #{tpu_custom_call.1} parent=1 // pred_region
      %s11 = ssub.s32 1024, 1024
      %12 = vsyncadd [#allocation3], %s11
      %s14 = sshll.u32 [#allocation2], 4
      %s15 = int_to_ptr.vmem [resolvable:$true] %s14
      %17 = dma.hbm_to_vmem [thread:$0]  %s0, 1024, %s15, [#allocation3]
    $region5: #{tpu_custom_call.1} parent=1 // pred_fallthru
      _
    // Predicated region
    $region6: #{tpu_custom_call.1} parent=1 // pred_check
      _
    $region7: #{tpu_custom_call.1} parent=1 // pred_check_branch
      %19 = sbr.rel (0) target = $region9
    $region8: #{tpu_custom_call.1} parent=1 // pred_region
      %20 = dma.done [#allocation3], 1024
    $region9: #{tpu_custom_call.1} parent=1 // pred_fallthru
      _
    %v21 = vld [vmem:[#allocation2] sm:$0xff]
    %v22 = vld [vmem:[#allocation2 + $0x8] sm:$0xff]
    %v23 = vld [vmem:[#allocation2 + $0x10] sm:$0xff]
    %v24 = vld [vmem:[#allocation2 + $0x18] sm:$0xff]
    %v25 = vld [vmem:[#allocation2 + $0x20] sm:$0xff]
    %v26 = vld [vmem:[#allocation2 + $0x28] sm:$0xff]
    %v27 = vld [vmem:[#allocation2 + $0x30] sm:$0xff]
    %v28 = vld [vmem:[#allocation2 + $0x38] sm:$0xff]
    %v29 = vmul.f32 %v21, %v21
    %v30 = vmul.f32 %v22, %v22
    %v31 = vmul.f32 %v23, %v23
    %v32 = vmul.f32 %v24, %v24
    %v33 = vmul.f32 %v25, %v25
    %v34 = vmul.f32 %v26, %v26
    %v35 = vmul.f32 %v27, %v27
    %v36 = vmul.f32 %v28, %v28
    %37 = vst [vmem:[#allocation5] sm:$0xff] %v29
    %38 = vst [vmem:[#allocation5 + $0x8] sm:$0xff] %v30
    %39 = vst [vmem:[#allocation5 + $0x10] sm:$0xff] %v31
    %40 = vst [vmem:[#allocation5 + $0x18] sm:$0xff] %v32
    %41 = vst [vmem:[#allocation5 + $0x20] sm:$0xff] %v33
    %42 = vst [vmem:[#allocation5 + $0x28] sm:$0xff] %v34
    %43 = vst [vmem:[#allocation5 + $0x30] sm:$0xff] %v35
    %44 = vst [vmem:[#allocation5 + $0x38] sm:$0xff] %v36
    // Predicated region
    $region10: #{tpu_custom_call.1} parent=1 // pred_check
      _
    $region11: #{tpu_custom_call.1} parent=1 // pred_check_branch
      %46 = sbr.rel (0) target = $region13
    $region12: #{tpu_custom_call.1} parent=1 // pred_region
      %s48 = ssub.s32 1024, 1024
      %49 = vsyncadd [#allocation4], %s48
      %s51 = sshll.u32 [#allocation5], 4
      %s52 = int_to_ptr.vmem [resolvable:$true] %s51
      %54 = dma.vmem_to_hbm [thread:$0]  %s52, 1024, %s1, [#allocation4]
    $region13: #{tpu_custom_call.1} parent=1 // pred_fallthru
      _
    // Predicated region
    $region14: #{tpu_custom_call.1} parent=1 // pred_check
      _
    $region15: #{tpu_custom_call.1} parent=1 // pred_check_branch
      %56 = sbr.rel (0) target = $region17
    $region16: #{tpu_custom_call.1} parent=1 // pred_region
      %57 = dma.done [#allocation4], 1024
    $region17: #{tpu_custom_call.1} parent=1 // pred_fallthru
      _
    %58 = vsyncpa [#allocation3], 1
    %59 = vsyncpa [#allocation4], 1

</llo_original>
